<compile_context>
chip_gen: v6e
topology: v6e:2x2x1
jax: 0.10.0
libtpu: 0.0.40
codegen_flags: <defaults>
</compile_context>

<pallas_src>
import functools

import jax
import jax.numpy as jnp
from jax.experimental import pallas as pl
from jax.experimental.pallas import tpu as pltpu


def _round_up(a, b):
    return (a + b - 1) // b * b


def _basic_block_kernel(seed_ref, w_ref, b_ref, p_ref, o_ref, *, rate, block_m):
    # Convolution as an MXU matmul: (C_out, Kdim) @ (Kdim, block_m).
    acc = jnp.dot(w_ref[...], p_ref[...], preferred_element_type=jnp.float32)
    acc = acc + b_ref[...]                      # (C_out, 1) broadcast over cols
    acc = jnp.maximum(acc, 0.0)                 # ReLU

    # Dropout (F.dropout default training=True): drop with prob `rate`,
    # scale kept values by 1/(1-rate).
    if rate > 0.0:
        # Counter-based hash -> uniform uint32 per element. Column index is
        # global (tile offset folded in), so each tile's mask is independent.
        col0 = pl.program_id(0) * block_m
        rows = jax.lax.broadcasted_iota(jnp.int32, acc.shape, 0).astype(jnp.uint32)
        cols = (jax.lax.broadcasted_iota(jnp.int32, acc.shape, 1) + col0).astype(jnp.uint32)
        h = seed_ref[0].astype(jnp.uint32)
        h = h + rows * jnp.uint32(0x9E3779B1) + cols * jnp.uint32(0x85EBCA77)
        h = h ^ (h >> 16)
        h = h * jnp.uint32(0x7FEB352D)
        h = h ^ (h >> 15)
        h = h * jnp.uint32(0x846CA68B)
        h = h ^ (h >> 16)
        threshold = jnp.uint32(min(int(round(rate * 2.0 ** 32)), 2 ** 32 - 1))
        keep = h >= threshold                   # P(keep) = 1 - rate
        scale = jnp.float32(1.0 / (1.0 - rate))
        acc = jnp.where(keep, acc * scale, 0.0)

    o_ref[...] = acc.astype(o_ref.dtype)


def _im2col_t_nchw(x, kh, kw, stride, padding):
    """Transposed im2col: returns (Kdim, M) with Kdim ordered (C_in, KH, KW)
    (matching PyTorch's flattened weight) and M ordered (N, H_out, W_out)."""
    n, c_in, h, w = x.shape
    x_pad = jnp.pad(x, ((0, 0), (0, 0), (padding, padding), (padding, padding)))
    h_out = (h + 2 * padding - kh) // stride + 1
    w_out = (w + 2 * padding - kw) // stride + 1

    taps = []
    for i in range(kh):
        for j in range(kw):
            sl = x_pad[:, :, i:i + stride * h_out:stride, j:j + stride * w_out:stride]
            taps.append(sl)                     # (N, C_in, H_out, W_out)
    stacked = jnp.stack(taps, axis=0).reshape(kh, kw, n, c_in, h_out, w_out)
    # -> (C_in, KH, KW, N, H_out, W_out) -> (Kdim, M)
    pt = jnp.transpose(stacked, (3, 0, 1, 2, 4, 5))
    pt = pt.reshape(c_in * kh * kw, n * h_out * w_out)
    return pt, h_out, w_out


def basic_block_forward(x, weight, bias, *, stride=1, padding=0, rate=0.1,
                        seed=0, block_m=256):
    """conv2d(NCHW) -> ReLU -> dropout(p=rate); hot path fused in one kernel."""
    n, c_in, h, w = x.shape
    c_out, c_in_w, kh, kw = weight.shape
    assert c_in == c_in_w and kh == kw

    patches_t, h_out, w_out = _im2col_t_nchw(x, kh, kw, stride, padding)
    kdim, m = patches_t.shape

    # --- M-tile selection: lane-aligned, pipelined, VMEM-budgeted ----------
    bm = _round_up(min(block_m, max(m, 1)), 128)
    # keep 2x (patch tile + out tile) well under the default scoped VMEM on
    # every generation (v7x has only 64 MiB physical / 32 MiB default scoped).
    while bm > 128 and 2 * 4 * (kdim + c_out) * bm > 8 * 1024 * 1024:
        bm //= 2
    m_pad = _round_up(m, bm)
    if m_pad != m:
        patches_t = jnp.pad(patches_t, ((0, 0), (0, m_pad - m)))

    w_flat = weight.reshape(c_out, kdim)        # (C_out, Kdim), PyTorch order
    b_col = bias.reshape(c_out, 1)
    seed_arr = jnp.array([seed], dtype=jnp.int32)

    kernel = functools.partial(_basic_block_kernel, rate=float(rate), block_m=bm)

    flops = 2 * m_pad * kdim * c_out
    bytes_accessed = 4 * (kdim * m_pad + c_out * kdim + c_out + c_out * m_pad)

    out_t = pl.pallas_call(
        kernel,
        out_shape=jax.ShapeDtypeStruct((c_out, m_pad), x.dtype),
        grid_spec=pltpu.PrefetchScalarGridSpec(
            num_scalar_prefetch=1,
            grid=(m_pad // bm,),
            in_specs=[
                pl.BlockSpec((c_out, kdim), lambda i, seed: (0, 0)),  # resident
                pl.BlockSpec((c_out, 1), lambda i, seed: (0, 0)),     # resident
                pl.BlockSpec((kdim, bm), lambda i, seed: (0, i)),     # streamed
            ],
            out_specs=pl.BlockSpec((c_out, bm), lambda i, seed: (0, i)),
        ),
        compiler_params=pltpu.CompilerParams(
            dimension_semantics=("parallel",)),
        cost_estimate=pl.CostEstimate(
            flops=flops, transcendentals=0, bytes_accessed=bytes_accessed),
    )(seed_arr, w_flat, b_col, patches_t)

    # (C_out, M) -> (C_out, N, H_out, W_out) -> NCHW (module contract).
    out = out_t[:, :m].reshape(c_out, n, h_out, w_out)
    out = jnp.transpose(out, (1, 0, 2, 3))
    return out


if __name__ == "__main__":
    # Module config (deterministic synthetic params, no checkpoint).
    N, C_IN, H, W = 2, 4, 16, 16
    C_OUT, K, STRIDE, PADDING, RATE = 8, 3, 1, 1, 0.1

    key = jax.random.PRNGKey(0)
    kx, kw_, kb = jax.random.split(key, 3)
    x = jax.random.normal(kx, (N, C_IN, H, W), dtype=jnp.float32)
    weight = jax.random.normal(kw_, (C_OUT, C_IN, K, K), dtype=jnp.float32) * 0.1
    bias = jax.random.normal(kb, (C_OUT,), dtype=jnp.float32) * 0.1

    # Correctness check of the fused conv+bias+ReLU path (dropout disabled).
    ref = jax.lax.conv_general_dilated(
        x, weight, window_strides=(STRIDE, STRIDE),
        padding=[(PADDING, PADDING), (PADDING, PADDING)],
        dimension_numbers=("NCHW", "OIHW", "NCHW"))
    ref = jnp.maximum(ref + bias.reshape(1, C_OUT, 1, 1), 0.0)
    got = basic_block_forward(x, weight, bias, stride=STRIDE, padding=PADDING,
                              rate=0.0, seed=0)
    assert got.shape == ref.shape, (got.shape, ref.shape)
    assert jnp.allclose(got, ref, atol=1e-4, rtol=1e-4), "conv+relu mismatch"

    # Full forward with dropout (training mode, as in the PyTorch module).
    out = basic_block_forward(x, weight, bias, stride=STRIDE, padding=PADDING,
                              rate=RATE, seed=42)
    jax.block_until_ready(out)
    assert out.shape == (N, C_OUT, H, W), out.shape
    print("KERNEL_OK")
</pallas_src>

<mosaic_0001>
module attributes {stable_mosaic.version = 11 : i64} {
  func.func @_basic_block_kernel(%arg0: i32, %arg1: memref<1xi32, #tpu.memory_space<smem>>, %arg2: memref<8x36xf32, #tpu.memory_space<vmem>>, %arg3: memref<8x1xf32, #tpu.memory_space<vmem>>, %arg4: memref<36x256xf32, #tpu.memory_space<vmem>>, %arg5: memref<8x256xf32, #tpu.memory_space<vmem>>) attributes {dimension_semantics = [#tpu.dimension_semantics<parallel>], iteration_bounds = array<i64: 2>, scalar_prefetch = 1 : i64, scratch_operands = 0 : i64, tpu.core_type = #tpu.core_type<tc>, window_params = [{pipeline_mode = #tpu.pipeline_mode<synchronous>, transform_indices = @transform_0, window_bounds = array<i64: 8, 36>}, {pipeline_mode = #tpu.pipeline_mode<synchronous>, transform_indices = @transform_1, window_bounds = array<i64: 8, 1>}, {transform_indices = @transform_2, window_bounds = array<i64: 36, 256>}, {transform_indices = @transform_3, window_bounds = array<i64: 8, 256>}]} {
    %c0 = arith.constant 0 : index
    %c0_0 = arith.constant 0 : index
    %0 = vector.load %arg2[%c0, %c0_0] : memref<8x36xf32, #tpu.memory_space<vmem>>, vector<8x36xf32>
    %c0_1 = arith.constant 0 : index
    %c0_2 = arith.constant 0 : index
    %1 = vector.load %arg4[%c0_1, %c0_2] : memref<36x256xf32, #tpu.memory_space<vmem>>, vector<36x256xf32>
    %cst = arith.constant dense<0.000000e+00> : vector<8x256xf32>
    %2 = tpu.matmul %0, %1, %cst {dimension_numbers = #tpu.dot_dimension_numbers<[1], [0], [0], [1], [0, 0, 1, 1], [], []>} : vector<8x36xf32>, vector<36x256xf32>, vector<8x256xf32> -> vector<8x256xf32>
    %c0_3 = arith.constant 0 : index
    %c0_4 = arith.constant 0 : index
    %3 = vector.load %arg3[%c0_3, %c0_4] : memref<8x1xf32, #tpu.memory_space<vmem>>, vector<8x1xf32>
    %4 = vector.broadcast %3 : vector<8x1xf32> to vector<8x256xf32>
    %5 = arith.addf %2, %4 : vector<8x256xf32>
    %cst_5 = arith.constant 0.000000e+00 : f32
    %6 = vector.broadcast %cst_5 : f32 to vector<8x256xf32>
    %7 = arith.maximumf %5, %6 : vector<8x256xf32>
    %c0_6 = arith.constant 0 : index
    %c0_7 = arith.constant 0 : index
    %8 = vector.load %arg5[%c0_6, %c0_7] : memref<8x256xf32, #tpu.memory_space<vmem>>, vector<8x256xf32>
    tpu.vector_store %arg5[%c0_6, %c0_7], %7 {strides = array<i32>} : memref<8x256xf32, #tpu.memory_space<vmem>>, vector<8x256xf32>,
    return
  }
  func.func @transform_0(%arg0: i32, %arg1: memref<1xi32, #tpu.memory_space<smem>>) -> (i32, i32) {
    %c0_i32 = arith.constant 0 : i32
    %c0_i32_0 = arith.constant 0 : i32
    %c0_i32_1 = arith.constant 0 : i32
    return %c0_i32, %c0_i32_0 : i32, i32
  }
  func.func @transform_1(%arg0: i32, %arg1: memref<1xi32, #tpu.memory_space<smem>>) -> (i32, i32) {
    %c0_i32 = arith.constant 0 : i32
    %c0_i32_0 = arith.constant 0 : i32
    %c0_i32_1 = arith.constant 0 : i32
    return %c0_i32, %c0_i32_0 : i32, i32
  }
  func.func @transform_2(%arg0: i32, %arg1: memref<1xi32, #tpu.memory_space<smem>>) -> (i32, i32) {
    %c0_i32 = arith.constant 0 : i32
    %c0_i32_0 = arith.constant 0 : i32
    return %c0_i32, %arg0 : i32, i32
  }
  func.func @transform_3(%arg0: i32, %arg1: memref<1xi32, #tpu.memory_space<smem>>) -> (i32, i32) {
    %c0_i32 = arith.constant 0 : i32
    %c0_i32_0 = arith.constant 0 : i32
    return %c0_i32, %arg0 : i32, i32
  }
}

</mosaic_0001>

<llo_original>
// kernel: tpu_custom_call.1
$region0: #{tpu_custom_call.1}
  #allocation0 [shape = 'u32[]', space=smem, size = 0x4, offset = 0x4, fixed_abs, tag = 'smem constant byte address 0x4 - core index']
  #allocation1 [shape = 'u32[144,128]{1,0:T(1,128)}', space=vmem, size = 0x12000, scoped, tag = 'internal scratch']
  #allocation2 [shape = 's32[1]{0}', space=sflag, size = 0x4, scoped, tag = 'scoped memory for tpu_custom_call.1']
  #allocation3 [shape = 's32[1]{0:T(128)S(6)}', space=smem, size = 0x200, scoped, tag = 'prefetched SMEM operand 0']
  %s0 = inlined_call_operand.<no memory space> [shape: s32[1], index: 0, kind: input, shape index: {}]
  %s1 = inlined_call_operand.vmem [shape: f32[8,36], index: 1, kind: input, shape index: {}]
  %s2 = inlined_call_operand.vmem [shape: f32[8,1], index: 2, kind: input, shape index: {}]
  %s3 = inlined_call_operand.hbm [shape: f32[36,512], index: 3, kind: input, shape index: {}]
  %s4 = inlined_call_operand.hbm [shape: f32[8,512], index: 4, kind: output, shape index: {}]
  %s5 = sld [smem:[#allocation0]]
  $region49: #{tpu_custom_call.1} parent=0
    _
  %s7 = ssub.s32 1, %s5
  %s8 = scalar_select 0, %s7, %s5
  %9 = sst [smem:[#allocation3]] %s0
  $region1: #{tpu_custom_call.1} parent=0
    #allocation4 [shape = 'u8[81920]{0}', space=vmem, size = 0x14000, scoped, tag = 'input window, operand 3']
    #allocation5 [shape = 's32[2]{0}', space=sflag, size = 0x8, scoped, tag = 'scoped memory for tpu_custom_call.1']
    #allocation6 [shape = 's32[2]{0}', space=sflag, size = 0x8, scoped, tag = 'scoped memory for tpu_custom_call.1']
    #allocation7 [shape = 'u8[16384]{0}', space=vmem, size = 0x4000, scoped, tag = 'output window, operand 0']
    %10 = vsyncpa [#allocation5], 0
    %s11 = scalar_lea.sflag [#allocation5], 1
    %12 = vsyncpa %s11, 0
    %13 = vsyncpa [#allocation6], 0
    %s14 = scalar_lea.sflag [#allocation6], 1
    %15 = vsyncpa %s14, 0
    loop: start=0, step=1, limit=4
    $region2: #{tpu_custom_call.1} parent=1 // loop_pre_header
      _
    $region3: #{tpu_custom_call.1} parent=1 // loop_header
      %s17 = sphi 0, %s21
      %p18 = scmp.ge.s32.totalorder %s17, 4
      %s25 = sphi 0, %s25
      %s27 = sphi 0, %s25
      %s28 = sphi 0, %s27
      %s42 = sphi 0, %s28
      %s46 = sphi 0, %s46
      %s48 = sphi 0, %s46
      %s49 = sphi 0, %s48
      %s63 = sphi 0, %s49
      %s69 = sphi 0, %s71
      %s72 = sphi 0, %s69
      %s73 = sphi 0, %s72
      %s89 = sphi 0, %s73
      %s95 = sphi 0, %s97
      %s98 = sphi 0, %s95
      %s99 = sphi 0, %s98
      %s115 = sphi 0, %s99
    $region4: #{tpu_custom_call.1} parent=1 // loop_header_branch
      %20 = sbr.rel (%p18) target = $region8
    $region5: #{tpu_custom_call.1} parent=1 // loop_body
      %s22 = ssub.s32 %s17, 1
      %s23 = ssub.s32 %s17, 2
      %s24 = sadd.s32 %s17, 1
      %s26 = sadd.s32 %s25, 1
      %p29 = scmp.eq.s32.totalorder %s17, 1
      %p30 = scmp.ne.s32.totalorder %s25, %s27
      %p31 = scmp.eq.s32.totalorder %s17, 0
      %p32 = por %p30, %p31
      %p33 = scmp.ne.s32.totalorder %s25, %s27
      %p34 = scmp.eq.s32.totalorder %s22, 1
      %p35 = por %p33, %p34
      %p36 = scmp.ne.s32.totalorder %s27, %s28
      %p37 = scmp.eq.s32.totalorder %s22, 0
      %p38 = por %p36, %p37
      %p39 = scmp.ne.s32.totalorder %s27, %s28
      %p40 = scmp.eq.s32.totalorder %s23, 1
      %p41 = por %p39, %p40
      %p43 = scmp.ne.s32.totalorder %s28, %s42
      %p44 = scmp.eq.s32.totalorder %s23, 0
      %p45 = por %p43, %p44
      %s47 = sadd.s32 %s46, 1
      %p50 = scmp.eq.s32.totalorder %s17, 1
      %p51 = scmp.ne.s32.totalorder %s46, %s48
      %p52 = scmp.eq.s32.totalorder %s17, 0
      %p53 = por %p51, %p52
      %p54 = scmp.ne.s32.totalorder %s46, %s48
      %p55 = scmp.eq.s32.totalorder %s22, 1
      %p56 = por %p54, %p55
      %p57 = scmp.ne.s32.totalorder %s48, %s49
      %p58 = scmp.eq.s32.totalorder %s22, 0
      %p59 = por %p57, %p58
      %p60 = scmp.ne.s32.totalorder %s48, %s49
      %p61 = scmp.eq.s32.totalorder %s23, 1
      %p62 = por %p60, %p61
      %p64 = scmp.ne.s32.totalorder %s49, %s63
      %p65 = scmp.eq.s32.totalorder %s23, 0
      %p66 = por %p64, %p65
      %s67 = ssub.s32 %s17, %s24
      %p68 = scmp.eq.s32.totalorder %s67, 0
      %s70 = sadd.s32 %s69, 1
      %s71 = scalar_select %p68, %s69, %s70
      %p74 = pneg %p68
      %p75 = scmp.eq.s32.totalorder %s17, 1
      %p76 = por %p74, %p75
      %p77 = scmp.ne.s32.totalorder %s69, %s72
      %p78 = scmp.eq.s32.totalorder %s17, 0
      %p79 = por %p77, %p78
      %p80 = scmp.ne.s32.totalorder %s69, %s72
      %p81 = scmp.eq.s32.totalorder %s22, 1
      %p82 = por %p80, %p81
      %p83 = scmp.ne.s32.totalorder %s72, %s73
      %p84 = scmp.eq.s32.totalorder %s22, 0
      %p85 = por %p83, %p84
      %p86 = scmp.ne.s32.totalorder %s72, %s73
      %p87 = scmp.eq.s32.totalorder %s23, 1
      %p88 = por %p86, %p87
      %p90 = scmp.ne.s32.totalorder %s73, %s89
      %p91 = scmp.eq.s32.totalorder %s23, 0
      %p92 = por %p90, %p91
      %s93 = ssub.s32 %s17, %s24
      %p94 = scmp.eq.s32.totalorder %s93, 0
      %s96 = sadd.s32 %s95, 1
      %s97 = scalar_select %p94, %s95, %s96
      %p100 = pneg %p94
      %p101 = scmp.eq.s32.totalorder %s17, 1
      %p102 = por %p100, %p101
      %p103 = scmp.ne.s32.totalorder %s95, %s98
      %p104 = scmp.eq.s32.totalorder %s17, 0
      %p105 = por %p103, %p104
      %p106 = scmp.ne.s32.totalorder %s95, %s98
      %p107 = scmp.eq.s32.totalorder %s22, 1
      %p108 = por %p106, %p107
      %p109 = scmp.ne.s32.totalorder %s98, %s99
      %p110 = scmp.eq.s32.totalorder %s22, 0
      %p111 = por %p109, %p110
      %p112 = scmp.ne.s32.totalorder %s98, %s99
      %p113 = scmp.eq.s32.totalorder %s23, 1
      %p114 = por %p112, %p113
      %p116 = scmp.ne.s32.totalorder %s99, %s115
      %p117 = scmp.eq.s32.totalorder %s23, 0
      %p118 = por %p116, %p117
      %p119 = scmp.le.s32.totalorder 1, %s17
      %p120 = scmp.lt.s32.totalorder %s17, 3
      %p121 = pnand %p119, %p120
      %p122 = pneg %p121
      // Predicated region
      $region9: #{tpu_custom_call.1} parent=5 // pred_check
        _
      $region10: #{tpu_custom_call.1} parent=5 // pred_check_branch
        %124 = sbr.rel (%p121) target = $region12
      $region11: #{tpu_custom_call.1} parent=5 // pred_region
        %s125 = ssub.s32 %s17, 1
        // Predicated region
        $region13: #{tpu_custom_call.1} parent=11 // pred_check
          %p126 = pneg %p38
        $region14: #{tpu_custom_call.1} parent=11 // pred_check_branch
          %128 = sbr.rel (%p126) target = $region16
        $region15: #{tpu_custom_call.1} parent=11 // pred_region
          _
        $region16: #{tpu_custom_call.1} parent=11 // pred_fallthru
          _
        // Predicated region
        $region17: #{tpu_custom_call.1} parent=11 // pred_check
          %p129 = pneg %p59
        $region18: #{tpu_custom_call.1} parent=11 // pred_check_branch
          %131 = sbr.rel (%p129) target = $region20
        $region19: #{tpu_custom_call.1} parent=11 // pred_region
          _
        $region20: #{tpu_custom_call.1} parent=11 // pred_fallthru
          _
      $region12: #{tpu_custom_call.1} parent=5 // pred_fallthru
        _
      %p132 = scmp.lt.s32.totalorder %s17, 2
      // Predicated region
      $region21: #{tpu_custom_call.1} parent=5 // pred_check
        %p133 = pneg %p132
      $region22: #{tpu_custom_call.1} parent=5 // pred_check_branch
        %135 = sbr.rel (%p133) target = $region24
      $region23: #{tpu_custom_call.1} parent=5 // pred_region
        // Predicated region
        $region25: #{tpu_custom_call.1} parent=23 // pred_check
          %p136 = pneg %p79
        $region26: #{tpu_custom_call.1} parent=23 // pred_check_branch
          %138 = sbr.rel (%p136) target = $region28
        $region27: #{tpu_custom_call.1} parent=23 // pred_region
          %s139 = sand.u32 %s69, 1
          %s140 = scalar_lea.sflag [#allocation5], %s139
          %s141 = sand.u32 %s69, 1
          %s142 = smul.addr %s141, 80
          %s143 = scalar_lea.vmem [#allocation4], %s142
          %s144 = smul.u32 2, %s17
          %s146 = ssub.s32 1280, 1280
          %147 = vsyncadd %s140, %s146
          %s148 = smul.addr %s144, 128
          %s149 = scalar_lea.hbm %s3, %s148
          %s150 = sshll.u32 %s143, 4
          %s151 = int_to_ptr.vmem [resolvable:$true] %s150
          %156 = dma.hbm_to_vmem [thread:$0]  %s149, 1280, %s151, %s140, 512, 256, 16
        $region28: #{tpu_custom_call.1} parent=23 // pred_fallthru
          _
      $region24: #{tpu_custom_call.1} parent=5 // pred_fallthru
        _
      %p157 = scmp.le.s32.totalorder 1, %s17
      %p158 = scmp.lt.s32.totalorder %s17, 3
      %p159 = pnand %p157, %p158
      %p160 = pneg %p159
      // Predicated region
      $region29: #{tpu_custom_call.1} parent=5 // pred_check
        _
      $region30: #{tpu_custom_call.1} parent=5 // pred_check_branch
        %162 = sbr.rel (%p159) target = $region32
      $region31: #{tpu_custom_call.1} parent=5 // pred_region
        %s163 = ssub.s32 %s17, 1
        %s164 = sand.u32 %s72, 1
        %s165 = scalar_lea.sflag [#allocation5], %s164
        %s166 = sand.u32 %s72, 1
        %s167 = smul.addr %s166, 80
        %s168 = scalar_lea.vmem [#allocation4], %s167
        // Predicated region
        $region33: #{tpu_custom_call.1} parent=31 // pred_check
          %p169 = pneg %p85
        $region34: #{tpu_custom_call.1} parent=31 // pred_check_branch
          %171 = sbr.rel (%p169) target = $region36
        $region35: #{tpu_custom_call.1} parent=31 // pred_region
          %172 = dma.done %s165, 1280
        $region36: #{tpu_custom_call.1} parent=31 // pred_fallthru
          _
        %p173 = pneg %p38
        %p174 = pneg %p35
        %p175 = pneg %p59
        %p176 = pneg %p56
        %s177 = sand.u32 %s72, 1
        %s178 = scalar_lea.sflag [#allocation5], %s177
        %s179 = sand.u32 %s72, 1
        %s180 = smul.addr %s179, 80
        %s181 = scalar_lea.vmem [#allocation4], %s180
        %p182 = pneg %p85
        %p183 = pneg %p82
        %p184 = pneg %p111
        %p185 = pneg %p108
        %s186 = sand.u32 %s98, 1
        %s187 = scalar_lea.sflag [#allocation6], %s186
        %s188 = sand.u32 %s98, 1
        %s189 = smul.addr %s188, 16
        %s190 = scalar_lea.vmem [#allocation7], %s189
        %s191 = smul.u32 2, %s22
        %s192 = smul.u32 2, %s22
        %v193 = vld [vmem:[%s1] sm:$0xff]
        %v194 = vld [vmem:[%s168] sm:$0xff]
        %v195 = vld [vmem:[%s168 + $0x8] sm:$0xff]
        %v196 = vld [vmem:[%s168 + $0x10] sm:$0xff]
        %v197 = vld [vmem:[%s168 + $0x18] sm:$0xff]
        %v198 = vld [vmem:[%s168 + $0x20] sm:$0xff]
        %v199 = vld [vmem:[%s168 + $0x28] sm:$0xff]
        %v200 = vld [vmem:[%s168 + $0x30] sm:$0xff]
        %v201 = vld [vmem:[%s168 + $0x38] sm:$0xff]
        %v202 = vld [vmem:[%s168 + $0x40] sm:$0xf]
        %v203 = vld [vmem:[%s168 + $0x48] sm:$0xf]
        %v204 = vld [vmem:[%s2] sm:$0xff]
        %206 = vset.pattern.permute.xlu0 0
        %207 = vperm.xlu0 %206, %v204
        %v208 = vpop.permute.xlu0 %207
        %vm210 = vcmask 293888
        %v212 = vsel %vm210, %v193, 0
        %vm214 = vcmask 1043456
        %v216 = vsel %vm214, %v202, 0
        %v219 = vsel %vm214, %v203, 0
        %221 = vmatprep.subr.mxu0 0.0
        %222 = vmatpush1.msra.mxu0 0.0
        %223 = vmatprep.subr.mxu0 0.0
        %224 = vmatpush1.msra.mxu0 0.0
        %225 = vmatprep.subr.mxu0 0.0
        %226 = vmatpush1.msra.mxu0 0.0
        %227 = vmatprep.subr.mxu0 0.0
        %228 = vmatpush1.msra.mxu0 0.0
        %229 = vmatprep.subr.mxu0 0.0
        %230 = vmatpush1.msra.mxu0 0.0
        %231 = vmatprep.subr.mxu0 0.0
        %232 = vmatpush1.msra.mxu0 0.0
        %233 = vmatprep.subr.mxu0 0.0
        %234 = vmatpush1.msra.mxu0 0.0
        %235 = vmatprep.subr.mxu0 0.0
        %236 = vmatpush1.msra.mxu0 0.0
        %237 = vmatprep.subr.mxu0 0.0
        %238 = vmatpush1.msra.mxu0 0.0
        %239 = vmatprep.subr.mxu0 0.0
        %240 = vmatpush1.msra.mxu0 0.0
        %241 = vmatprep.subr.mxu0 0.0
        %242 = vmatpush1.msra.mxu0 0.0
        %243 = vmatprep.subr.mxu0 %v219
        %244 = vmatpush1.msra.mxu0 %v216
        %245 = vmatprep.subr.mxu0 %v201
        %246 = vmatpush1.msra.mxu0 %v200
        %247 = vmatprep.subr.mxu0 %v199
        %248 = vmatpush1.msra.mxu0 %v198
        %249 = vmatprep.subr.mxu0 %v197
        %250 = vmatpush1.msra.mxu0 %v196
        %251 = vmatprep.subr.mxu0 %v195
        %252 = vmatpush1.msra.mxu0 %v194
        %253 = vmatprep.subr.mxu0 0.0
        %254 = vmatpush2.msra.mxu0 0.0
        %255 = vmatprep.subr.mxu0 0.0
        %256 = vmatpush2.msra.mxu0 0.0
        %257 = vmatprep.subr.mxu0 0.0
        %258 = vmatpush2.msra.mxu0 0.0
        %259 = vmatprep.subr.mxu0 0.0
        %260 = vmatpush2.msra.mxu0 0.0
        %261 = vmatprep.subr.mxu0 0.0
        %262 = vmatpush2.msra.mxu0 0.0
        %263 = vmatprep.subr.mxu0 0.0
        %264 = vmatpush2.msra.mxu0 0.0
        %265 = vmatprep.subr.mxu0 0.0
        %266 = vmatpush2.msra.mxu0 0.0
        %267 = vmatprep.subr.mxu0 0.0
        %268 = vmatpush2.msra.mxu0 0.0
        %269 = vmatprep.subr.mxu0 0.0
        %270 = vmatpush2.msra.mxu0 0.0
        %271 = vmatprep.subr.mxu0 0.0
        %272 = vmatpush2.msra.mxu0 0.0
        %273 = vmatprep.subr.mxu0 0.0
        %274 = vmatpush2.msra.mxu0 0.0
        %275 = vmatprep.subr.mxu0 0.0
        %276 = vmatpush2.msra.mxu0 0.0
        %277 = vmatprep.subr.mxu0 0.0
        %278 = vmatpush2.msra.mxu0 0.0
        %279 = vmatprep.subr.mxu0 0.0
        %280 = vmatpush2.msra.mxu0 0.0
        %281 = vmatprep.subr.mxu0 0.0
        %282 = vmatpush2.msra.mxu0 0.0
        %283 = vmatprep.subr.mxu0 0.0
        %284 = vmatpush2.msra.mxu0 0.0
        %285 = vmatprep.mubr.f32.mxu0 0.0
        %286 = vmatmul.mubr.f32.gmra.mxu0 %v212
        %v287 = vpop.f32.mrf.mxu0
        %v288 = vadd.f32 %v208, %v287
        %v289 = vpop.f32.mrf.mxu0
        %v290 = vadd.f32 %v208, %v289
        %291 = vdwg.mxu0
        %v292 = vmax.f32 %v288, 0.0
        %v293 = vmax.f32 %v290, 0.0
        %294 = vst [vmem:[%s190] sm:$0xff] %v292
        %295 = vst [vmem:[%s190 + $0x8] sm:$0xff] %v293
        %s296 = sand.u32 %s98, 1
        %s297 = scalar_lea.sflag [#allocation6], %s296
        %s298 = sand.u32 %s98, 1
        %s299 = smul.addr %s298, 16
        %s300 = scalar_lea.vmem [#allocation7], %s299
        // Predicated region
        $region37: #{tpu_custom_call.1} parent=31 // pred_check
          %p301 = pneg %p108
        $region38: #{tpu_custom_call.1} parent=31 // pred_check_branch
          %303 = sbr.rel (%p301) target = $region40
        $region39: #{tpu_custom_call.1} parent=31 // pred_region
          %s304 = smul.u32 2, %s22
          %s306 = ssub.s32 256, 256
          %307 = vsyncadd %s297, %s306
          %s308 = smul.addr %s304, 128
          %s309 = scalar_lea.hbm %s4, %s308
          %s311 = sshll.u32 %s300, 4
          %s312 = int_to_ptr.vmem [resolvable:$true] %s311
          %314 = dma.vmem_to_hbm [thread:$0]  %s312, 256, %s309, %s297
        $region40: #{tpu_custom_call.1} parent=31 // pred_fallthru
          _
      $region32: #{tpu_custom_call.1} parent=5 // pred_fallthru
        _
      %p315 = scmp.le.s32.totalorder 2, %s17
      // Predicated region
      $region41: #{tpu_custom_call.1} parent=5 // pred_check
        %p316 = pneg %p315
      $region42: #{tpu_custom_call.1} parent=5 // pred_check_branch
        %318 = sbr.rel (%p316) target = $region44
      $region43: #{tpu_custom_call.1} parent=5 // pred_region
        %s319 = ssub.s32 %s17, 2
        // Predicated region
        $region45: #{tpu_custom_call.1} parent=43 // pred_check
          %p320 = pneg %p114
        $region46: #{tpu_custom_call.1} parent=43 // pred_check_branch
          %322 = sbr.rel (%p320) target = $region48
        $region47: #{tpu_custom_call.1} parent=43 // pred_region
          %s323 = sand.u32 %s99, 1
          %s324 = scalar_lea.sflag [#allocation6], %s323
          %s325 = sand.u32 %s99, 1
          %s326 = smul.addr %s325, 16
          %s327 = scalar_lea.vmem [#allocation7], %s326
          %328 = dma.done %s324, 256
        $region48: #{tpu_custom_call.1} parent=43 // pred_fallthru
          _
      $region44: #{tpu_custom_call.1} parent=5 // pred_fallthru
        _
    $region6: #{tpu_custom_call.1} parent=1 // loop_footer
      %s21 = sadd.s32 1, %s17
    $region7: #{tpu_custom_call.1} parent=1 // loop_footer_branch
      %16 = sbr.rel target = $region3
    $region8: #{tpu_custom_call.1} parent=1 // loop_exit
      _
    %329 = vsyncpa [#allocation5], 1
    %s330 = scalar_lea.sflag [#allocation5], 1
    %331 = vsyncpa %s330, 1
    %332 = vsyncpa [#allocation6], 1
    %s333 = scalar_lea.sflag [#allocation6], 1
    %334 = vsyncpa %s333, 1

</llo_original>
